<compile_context>
chip_gen: v7x
topology: tpu7x:2x2x1
jax: 0.10.0
libtpu: 0.0.40
codegen_flags: <defaults>
</compile_context>

<pallas_src>
import functools

import jax
import jax.numpy as jnp
from jax.experimental import pallas as pl
from jax.experimental.pallas import tpu as pltpu


def _round_up(x, m):
    return ((x + m - 1) // m) * m


def _sigmoid(a):
    # sigmoid(a) == 0.5 * tanh(0.5 * a) + 0.5  (single EUP op + VPU fma)
    return 0.5 * jnp.tanh(0.5 * a) + 0.5


def autoencoder_kernel(x_ref, wg_ref, bg_ref, ws_ref, bs_ref, wh_ref, bh_ref,
                       out_ref):
    # bf16 MXU operands, fp32 accumulation; bias add + sigmoid in fp32 (v5e-safe).
    x = x_ref[...].astype(jnp.bfloat16)

    # g: Linear(num_question -> k) + sigmoid
    a_g = jnp.dot(x, wg_ref[...], preferred_element_type=jnp.float32) + bg_ref[...]
    o1 = _sigmoid(a_g).astype(jnp.bfloat16)

    # s: Linear(k -> k) + sigmoid
    a_s = jnp.dot(o1, ws_ref[...], preferred_element_type=jnp.float32) + bs_ref[...]
    o2 = _sigmoid(a_s).astype(jnp.bfloat16)

    # h: Linear(k -> num_question) + sigmoid
    a_h = jnp.dot(o2, wh_ref[...], preferred_element_type=jnp.float32) + bh_ref[...]
    out_ref[...] = _sigmoid(a_h).astype(out_ref.dtype)


def _pick_bm(batch, bm_max, num_cores=2):
    """Row-tile size: as large as bm_max (amortizes ~0.35 us/grid-step overhead),
    but split so the grid length is a multiple of 2 (>=2) when the batch allows,
    so v7x's two TensorCores both get work. Always a multiple of 8 (sublanes)."""
    bm_max = max(8, _round_up(bm_max, 8))
    n = max(1, pl.cdiv(batch, num_cores * bm_max))
    bm = min(bm_max, _round_up(pl.cdiv(batch, num_cores * n), 8))
    return max(8, bm)


def autoencoder_forward(x, params, *, bm_max=2048, out_dtype=jnp.bfloat16):
    """Fused AutoEncoder forward.

    x: (B, num_question).  params: output of prepare_params() — pre-transposed,
    hidden-dim zero-padded, bf16 weights / fp32 biases.  Returns (B, num_question)
    in out_dtype.  No wrapper pad/slice: Pallas masks the ragged last batch tile.
    """
    B, nq = x.shape
    kp = params["wg"].shape[1]
    assert params["ws"].shape == (kp, kp) and params["wh"].shape == (kp, nq)

    bm = _pick_bm(B, bm_max)
    grid = (pl.cdiv(B, bm),)

    x_bytes = jnp.dtype(x.dtype).itemsize
    o_bytes = jnp.dtype(out_dtype).itemsize
    w_bytes = sum(int(v.size) * jnp.dtype(v.dtype).itemsize for v in params.values())

    flops = 2 * B * (nq * kp + kp * kp + kp * nq)
    transcendentals = B * (2 * kp + nq)            # one tanh per activation
    bytes_accessed = B * nq * (x_bytes + o_bytes) + w_bytes

    # VMEM budget: double-buffered x/out tiles + resident weights + fp32 temporaries.
    vmem_est = (2 * bm * nq * (x_bytes + o_bytes)
                + 2 * w_bytes
                + bm * (3 * kp + 2 * nq) * 4)
    vmem_limit = int(min(max(vmem_est * 5 // 4, 32 * 1024 * 1024),
                         56 * 1024 * 1024))        # stay under v7x's 64 MiB physical

    return pl.pallas_call(
        autoencoder_kernel,
        out_shape=jax.ShapeDtypeStruct((B, nq), out_dtype),
        grid_spec=pltpu.PrefetchScalarGridSpec(
            num_scalar_prefetch=0,
            grid=grid,
            in_specs=[
                pl.BlockSpec((bm, nq), lambda i: (i, 0)),   # x tile (streams)
                # Constant block index => weights/biases stay VMEM-resident
                # across grid steps (no per-step re-DMA).
                pl.BlockSpec((nq, kp), lambda i: (0, 0)),   # Wg^T (bf16)
                pl.BlockSpec((1, kp), lambda i: (0, 0)),    # bg   (fp32)
                pl.BlockSpec((kp, kp), lambda i: (0, 0)),   # Ws^T
                pl.BlockSpec((1, kp), lambda i: (0, 0)),    # bs
                pl.BlockSpec((kp, nq), lambda i: (0, 0)),   # Wh^T
                pl.BlockSpec((1, nq), lambda i: (0, 0)),    # bh
            ],
            out_specs=pl.BlockSpec((bm, nq), lambda i: (i, 0)),
        ),
        compiler_params=pltpu.CompilerParams(
            dimension_semantics=("parallel",),              # megacore / v7x 2-TC split
            vmem_limit_bytes=vmem_limit),
        cost_estimate=pl.CostEstimate(
            flops=flops,
            transcendentals=transcendentals,
            bytes_accessed=bytes_accessed),
    )(x, params["wg"], params["bg"], params["ws"], params["bs"],
      params["wh"], params["bh"])


def make_raw_params(key, num_question, k):
    """Deterministic synthetic parameters in PyTorch nn.Linear layout:
    weight (out_features, in_features), bias (out_features,)."""
    kg, ks, kh, kbg, kbs, kbh = jax.random.split(key, 6)
    return dict(
        g_w=jax.random.normal(kg, (k, num_question), jnp.float32) * 0.05,
        g_b=jax.random.normal(kbg, (k,), jnp.float32) * 0.05,
        s_w=jax.random.normal(ks, (k, k), jnp.float32) * 0.05,
        s_b=jax.random.normal(kbs, (k,), jnp.float32) * 0.05,
        h_w=jax.random.normal(kh, (num_question, k), jnp.float32) * 0.05,
        h_b=jax.random.normal(kbh, (num_question,), jnp.float32) * 0.05,
    )


def prepare_params(raw, *, lane=128):
    """One-time conversion of PyTorch-layout params for the kernel: transpose to
    (in_features, out_features), zero-pad the hidden dim k up to a multiple of 128,
    cast weights to bf16 (MXU operands), keep biases fp32.

    Padding is exact: padded hidden units evaluate to sigmoid(0)=0.5, but the
    corresponding ROWS of Ws^T and Wh^T (and the padded bias entries) are zero,
    so they contribute nothing downstream — identical to the unpadded model.
    """
    k, nq = raw["g_w"].shape
    kp = _round_up(k, lane)
    f32 = jnp.float32

    wg = jnp.zeros((nq, kp), f32).at[:, :k].set(raw["g_w"].T)
    bg = jnp.zeros((1, kp), f32).at[0, :k].set(raw["g_b"])
    ws = jnp.zeros((kp, kp), f32).at[:k, :k].set(raw["s_w"].T)
    bs = jnp.zeros((1, kp), f32).at[0, :k].set(raw["s_b"])
    wh = jnp.zeros((kp, nq), f32).at[:k, :].set(raw["h_w"].T)
    bh = raw["h_b"].reshape(1, nq).astype(f32)

    return dict(wg=wg.astype(jnp.bfloat16), bg=bg,
                ws=ws.astype(jnp.bfloat16), bs=bs,
                wh=wh.astype(jnp.bfloat16), bh=bh)


def reference_forward(x, raw):
    """Pure-JAX fp32 reference of AutoEncoder.forward (uses the UNpadded params)."""
    o1 = jax.nn.sigmoid(x @ raw["g_w"].T + raw["g_b"])
    o2 = jax.nn.sigmoid(o1 @ raw["s_w"].T + raw["s_b"])
    return jax.nn.sigmoid(o2 @ raw["h_w"].T + raw["h_b"])


if __name__ == "__main__":
    num_question = 256   # input/output feature dim (multiple of 128 -> lane dense)
    k = 100              # module default hidden dim; zero-padded to 128 in code
    batch = 200          # NOT a multiple of the tile -> exercises ragged-tail masking

    key = jax.random.PRNGKey(0)
    kx, kparam = jax.random.split(key)
    x = jax.random.normal(kx, (batch, num_question), jnp.float32)

    raw = make_raw_params(kparam, num_question, k)
    params = prepare_params(raw)   # one-time: transpose + zero-pad k->128 + bf16 cast

    # _pick_bm gives bm=104 here => grid=(2,) (both v7x TCs) with a ragged last
    # tile (rows 200..207 masked on write).  Production batches use bm up to 2048.
    fwd = jax.jit(functools.partial(autoencoder_forward,
                                    bm_max=2048, out_dtype=jnp.bfloat16))
    out = jax.block_until_ready(fwd(x, params))

    ref = reference_forward(x, raw)
    assert out.shape == (batch, num_question)
    assert out.dtype == jnp.bfloat16
    # bf16 matmul operands + bf16 output quantization => loose tolerance vs fp32 ref.
    err = float(jnp.max(jnp.abs(out.astype(jnp.float32) - ref)))
    assert err < 3e-2, err

    print("KERNEL_OK")
</pallas_src>

<mosaic_0001>
module attributes {stable_mosaic.version = 11 : i64} {
  func.func @autoencoder_kernel(%arg0: i32, %arg1: memref<104x256xf32, #tpu.memory_space<vmem>>, %arg2: memref<256x128xbf16, #tpu.memory_space<vmem>>, %arg3: memref<1x128xf32, #tpu.memory_space<vmem>>, %arg4: memref<128x128xbf16, #tpu.memory_space<vmem>>, %arg5: memref<1x128xf32, #tpu.memory_space<vmem>>, %arg6: memref<128x256xbf16, #tpu.memory_space<vmem>>, %arg7: memref<1x256xf32, #tpu.memory_space<vmem>>, %arg8: memref<104x256xbf16, #tpu.memory_space<vmem>>) attributes {dimension_semantics = [#tpu.dimension_semantics<parallel>], iteration_bounds = array<i64: 2>, scalar_prefetch = 0 : i64, scratch_operands = 0 : i64, tpu.core_type = #tpu.core_type<tc>, window_params = [{transform_indices = @transform_0, window_bounds = array<i64: 104, 256>}, {pipeline_mode = #tpu.pipeline_mode<synchronous>, transform_indices = @transform_1, window_bounds = array<i64: 256, 128>}, {pipeline_mode = #tpu.pipeline_mode<synchronous>, transform_indices = @transform_2, window_bounds = array<i64: 1, 128>}, {pipeline_mode = #tpu.pipeline_mode<synchronous>, transform_indices = @transform_3, window_bounds = array<i64: 128, 128>}, {pipeline_mode = #tpu.pipeline_mode<synchronous>, transform_indices = @transform_4, window_bounds = array<i64: 1, 128>}, {pipeline_mode = #tpu.pipeline_mode<synchronous>, transform_indices = @transform_5, window_bounds = array<i64: 128, 256>}, {pipeline_mode = #tpu.pipeline_mode<synchronous>, transform_indices = @transform_6, window_bounds = array<i64: 1, 256>}, {transform_indices = @transform_7, window_bounds = array<i64: 104, 256>}]} {
    %c0 = arith.constant 0 : index
    %c0_0 = arith.constant 0 : index
    %0 = vector.load %arg1[%c0, %c0_0] : memref<104x256xf32, #tpu.memory_space<vmem>>, vector<104x256xf32>
    %1 = arith.truncf %0 : vector<104x256xf32> to vector<104x256xbf16>
    %c0_1 = arith.constant 0 : index
    %c0_2 = arith.constant 0 : index
    %2 = vector.load %arg2[%c0_1, %c0_2] : memref<256x128xbf16, #tpu.memory_space<vmem>>, vector<256x128xbf16>
    %cst = arith.constant dense<0.000000e+00> : vector<104x128xf32>
    %3 = tpu.matmul %1, %2, %cst {dimension_numbers = #tpu.dot_dimension_numbers<[1], [0], [0], [1], [0, 0, 1, 1], [], []>} : vector<104x256xbf16>, vector<256x128xbf16>, vector<104x128xf32> -> vector<104x128xf32>
    %c0_3 = arith.constant 0 : index
    %c0_4 = arith.constant 0 : index
    %4 = vector.load %arg3[%c0_3, %c0_4] : memref<1x128xf32, #tpu.memory_space<vmem>>, vector<1x128xf32>
    %5 = vector.broadcast %4 : vector<1x128xf32> to vector<104x128xf32>
    %6 = arith.addf %3, %5 : vector<104x128xf32>
    %cst_5 = arith.constant 5.000000e-01 : f32
    %7 = vector.broadcast %cst_5 : f32 to vector<104x128xf32>
    %8 = arith.mulf %7, %6 : vector<104x128xf32>
    %9 = math.tanh %8 : vector<104x128xf32>
    %cst_6 = arith.constant 5.000000e-01 : f32
    %10 = vector.broadcast %cst_6 : f32 to vector<104x128xf32>
    %11 = arith.mulf %10, %9 : vector<104x128xf32>
    %cst_7 = arith.constant 5.000000e-01 : f32
    %12 = vector.broadcast %cst_7 : f32 to vector<104x128xf32>
    %13 = arith.addf %11, %12 : vector<104x128xf32>
    %14 = arith.truncf %13 : vector<104x128xf32> to vector<104x128xbf16>
    %c0_8 = arith.constant 0 : index
    %c0_9 = arith.constant 0 : index
    %15 = vector.load %arg4[%c0_8, %c0_9] : memref<128x128xbf16, #tpu.memory_space<vmem>>, vector<128x128xbf16>
    %cst_10 = arith.constant dense<0.000000e+00> : vector<104x128xf32>
    %16 = tpu.matmul %14, %15, %cst_10 {dimension_numbers = #tpu.dot_dimension_numbers<[1], [0], [0], [1], [0, 0, 1, 1], [], []>} : vector<104x128xbf16>, vector<128x128xbf16>, vector<104x128xf32> -> vector<104x128xf32>
    %c0_11 = arith.constant 0 : index
    %c0_12 = arith.constant 0 : index
    %17 = vector.load %arg5[%c0_11, %c0_12] : memref<1x128xf32, #tpu.memory_space<vmem>>, vector<1x128xf32>
    %18 = vector.broadcast %17 : vector<1x128xf32> to vector<104x128xf32>
    %19 = arith.addf %16, %18 : vector<104x128xf32>
    %cst_13 = arith.constant 5.000000e-01 : f32
    %20 = vector.broadcast %cst_13 : f32 to vector<104x128xf32>
    %21 = arith.mulf %20, %19 : vector<104x128xf32>
    %22 = math.tanh %21 : vector<104x128xf32>
    %cst_14 = arith.constant 5.000000e-01 : f32
    %23 = vector.broadcast %cst_14 : f32 to vector<104x128xf32>
    %24 = arith.mulf %23, %22 : vector<104x128xf32>
    %cst_15 = arith.constant 5.000000e-01 : f32
    %25 = vector.broadcast %cst_15 : f32 to vector<104x128xf32>
    %26 = arith.addf %24, %25 : vector<104x128xf32>
    %27 = arith.truncf %26 : vector<104x128xf32> to vector<104x128xbf16>
    %c0_16 = arith.constant 0 : index
    %c0_17 = arith.constant 0 : index
    %28 = vector.load %arg6[%c0_16, %c0_17] : memref<128x256xbf16, #tpu.memory_space<vmem>>, vector<128x256xbf16>
    %cst_18 = arith.constant dense<0.000000e+00> : vector<104x256xf32>
    %29 = tpu.matmul %27, %28, %cst_18 {dimension_numbers = #tpu.dot_dimension_numbers<[1], [0], [0], [1], [0, 0, 1, 1], [], []>} : vector<104x128xbf16>, vector<128x256xbf16>, vector<104x256xf32> -> vector<104x256xf32>
    %c0_19 = arith.constant 0 : index
    %c0_20 = arith.constant 0 : index
    %30 = vector.load %arg7[%c0_19, %c0_20] : memref<1x256xf32, #tpu.memory_space<vmem>>, vector<1x256xf32>
    %31 = vector.broadcast %30 : vector<1x256xf32> to vector<104x256xf32>
    %32 = arith.addf %29, %31 : vector<104x256xf32>
    %cst_21 = arith.constant 5.000000e-01 : f32
    %33 = vector.broadcast %cst_21 : f32 to vector<104x256xf32>
    %34 = arith.mulf %33, %32 : vector<104x256xf32>
    %35 = math.tanh %34 : vector<104x256xf32>
    %cst_22 = arith.constant 5.000000e-01 : f32
    %36 = vector.broadcast %cst_22 : f32 to vector<104x256xf32>
    %37 = arith.mulf %36, %35 : vector<104x256xf32>
    %cst_23 = arith.constant 5.000000e-01 : f32
    %38 = vector.broadcast %cst_23 : f32 to vector<104x256xf32>
    %39 = arith.addf %37, %38 : vector<104x256xf32>
    %40 = arith.truncf %39 : vector<104x256xf32> to vector<104x256xbf16>
    %c0_24 = arith.constant 0 : index
    %c0_25 = arith.constant 0 : index
    %41 = vector.load %arg8[%c0_24, %c0_25] : memref<104x256xbf16, #tpu.memory_space<vmem>>, vector<104x256xbf16>
    tpu.vector_store %arg8[%c0_24, %c0_25], %40 {strides = array<i32>} : memref<104x256xbf16, #tpu.memory_space<vmem>>, vector<104x256xbf16>,
    return
  }
  func.func @transform_0(%arg0: i32) -> (i32, i32) {
    %c0_i32 = arith.constant 0 : i32
    %c0_i32_0 = arith.constant 0 : i32
    return %arg0, %c0_i32 : i32, i32
  }
  func.func @transform_1(%arg0: i32) -> (i32, i32) {
    %c0_i32 = arith.constant 0 : i32
    %c0_i32_0 = arith.constant 0 : i32
    %c0_i32_1 = arith.constant 0 : i32
    return %c0_i32, %c0_i32_0 : i32, i32
  }
  func.func @transform_2(%arg0: i32) -> (i32, i32) {
    %c0_i32 = arith.constant 0 : i32
    %c0_i32_0 = arith.constant 0 : i32
    %c0_i32_1 = arith.constant 0 : i32
    return %c0_i32, %c0_i32_0 : i32, i32
  }
  func.func @transform_3(%arg0: i32) -> (i32, i32) {
    %c0_i32 = arith.constant 0 : i32
    %c0_i32_0 = arith.constant 0 : i32
    %c0_i32_1 = arith.constant 0 : i32
    return %c0_i32, %c0_i32_0 : i32, i32
  }
  func.func @transform_4(%arg0: i32) -> (i32, i32) {
    %c0_i32 = arith.constant 0 : i32
    %c0_i32_0 = arith.constant 0 : i32
    %c0_i32_1 = arith.constant 0 : i32
    return %c0_i32, %c0_i32_0 : i32, i32
  }
  func.func @transform_5(%arg0: i32) -> (i32, i32) {
    %c0_i32 = arith.constant 0 : i32
    %c0_i32_0 = arith.constant 0 : i32
    %c0_i32_1 = arith.constant 0 : i32
    return %c0_i32, %c0_i32_0 : i32, i32
  }
  func.func @transform_6(%arg0: i32) -> (i32, i32) {
    %c0_i32 = arith.constant 0 : i32
    %c0_i32_0 = arith.constant 0 : i32
    %c0_i32_1 = arith.constant 0 : i32
    return %c0_i32, %c0_i32_0 : i32, i32
  }
  func.func @transform_7(%arg0: i32) -> (i32, i32) {
    %c0_i32 = arith.constant 0 : i32
    %c0_i32_0 = arith.constant 0 : i32
    return %arg0, %c0_i32 : i32, i32
  }
}

</mosaic_0001>

<llo_original>
// kernel: autoencoder_forward.1
$region0: #{autoencoder_forward.1}
  #allocation0 [shape = 'u32[]', space=smem, size = 0x4, offset = 0x4, fixed_abs, tag = 'smem constant byte address 0x4 - core index']
  #allocation1 [shape = 'u32[144,128]{1,0:T(1,128)}', space=vmem, size = 0x12000, scoped, tag = 'internal scratch']
  %s0 = inlined_call_operand.hbm [shape: f32[200,256], index: 0, kind: input, shape index: {}]
  %s1 = inlined_call_operand.hbm [shape: bf16[256,128], index: 1, kind: input, shape index: {}]
  %s2 = inlined_call_operand.vmem [shape: f32[1,128], index: 2, kind: input, shape index: {}]
  %s3 = inlined_call_operand.hbm [shape: bf16[128,128], index: 3, kind: input, shape index: {}]
  %s4 = inlined_call_operand.vmem [shape: f32[1,128], index: 4, kind: input, shape index: {}]
  %s5 = inlined_call_operand.hbm [shape: bf16[128,256], index: 5, kind: input, shape index: {}]
  %s6 = inlined_call_operand.vmem [shape: f32[1,256], index: 6, kind: input, shape index: {}]
  %s7 = inlined_call_operand.hbm [shape: bf16[200,256], index: 7, kind: output, shape index: {}]
  %s8 = sld [smem:[#allocation0]]
  $region77: #{autoencoder_forward.1} parent=0
    _
  %s10 = ssub.s32 1, %s8
  %s11 = scalar_select 0, %s10, %s8
  $region1: #{autoencoder_forward.1} parent=0
    #allocation2 [shape = 'u8[212992]{0}', space=vmem, size = 0x34000, scoped, tag = 'input window, operand 0']
    #allocation3 [shape = 's32[2]{0}', space=sflag, size = 0x8, scoped, tag = 'scoped memory for autoencoder_forward.1']
    #allocation4 [shape = 's32[2]{0}', space=sflag, size = 0x8, scoped, tag = 'scoped memory for autoencoder_forward.1']
    #allocation5 [shape = 'u8[65536]{0}', space=vmem, size = 0x10000, scoped, tag = 'input window, operand 1, single buffered']
    #allocation6 [shape = 's32[1]{0}', space=sflag, size = 0x4, scoped, tag = 'scoped memory for autoencoder_forward.1']
    #allocation7 [shape = 'u8[32768]{0}', space=vmem, size = 0x8000, scoped, tag = 'input window, operand 3, single buffered']
    #allocation8 [shape = 'u8[65536]{0}', space=vmem, size = 0x10000, scoped, tag = 'input window, operand 5, single buffered']
    #allocation9 [shape = 's32[1]{0}', space=sflag, size = 0x4, scoped, tag = 'scoped memory for autoencoder_forward.1']
    #allocation10 [shape = 'u8[106496]{0}', space=vmem, size = 0x1a000, scoped, tag = 'output window, operand 0']
    %12 = vsyncpa [#allocation3], 0
    %s13 = scalar_lea.sflag [#allocation3], 1
    %14 = vsyncpa %s13, 0
    %15 = vsyncpa [#allocation6], 0
    %16 = vsyncpa [#allocation9], 0
    %17 = vsyncpa [#allocation4], 0
    %s18 = scalar_lea.sflag [#allocation4], 1
    %19 = vsyncpa %s18, 0
    loop: start=0, step=1, limit=4
    $region2: #{autoencoder_forward.1} parent=1 // loop_pre_header
      _
    $region3: #{autoencoder_forward.1} parent=1 // loop_header
      %s21 = sphi 0, %s25
      %p22 = scmp.ge.s32.totalorder %s21, 4
      %s31 = sphi 0, %s33
      %s34 = sphi 0, %s31
      %s35 = sphi 0, %s34
      %s51 = sphi 0, %s35
      %s55 = sphi 0, %s55
      %s57 = sphi 0, %s55
      %s58 = sphi 0, %s57
      %s72 = sphi 0, %s58
      %s76 = sphi 0, %s76
      %s78 = sphi 0, %s76
      %s79 = sphi 0, %s78
      %s93 = sphi 0, %s79
      %s97 = sphi 0, %s97
      %s99 = sphi 0, %s97
      %s100 = sphi 0, %s99
      %s114 = sphi 0, %s100
      %s118 = sphi 0, %s118
      %s120 = sphi 0, %s118
      %s121 = sphi 0, %s120
      %s135 = sphi 0, %s121
      %s139 = sphi 0, %s139
      %s141 = sphi 0, %s139
      %s142 = sphi 0, %s141
      %s156 = sphi 0, %s142
      %s160 = sphi 0, %s160
      %s162 = sphi 0, %s160
      %s163 = sphi 0, %s162
      %s177 = sphi 0, %s163
      %s183 = sphi 0, %s185
      %s186 = sphi 0, %s183
      %s187 = sphi 0, %s186
      %s203 = sphi 0, %s187
    $region4: #{autoencoder_forward.1} parent=1 // loop_header_branch
      %24 = sbr.rel (%p22) target = $region8
    $region5: #{autoencoder_forward.1} parent=1 // loop_body
      %s26 = ssub.s32 %s21, 1
      %s27 = ssub.s32 %s21, 2
      %s28 = sadd.s32 %s21, 1
      %s29 = ssub.s32 %s21, %s28
      %p30 = scmp.eq.s32.totalorder %s29, 0
      %s32 = sadd.s32 %s31, 1
      %s33 = scalar_select %p30, %s31, %s32
      %p36 = pneg %p30
      %p37 = scmp.eq.s32.totalorder %s21, 1
      %p38 = por %p36, %p37
      %p39 = scmp.ne.s32.totalorder %s31, %s34
      %p40 = scmp.eq.s32.totalorder %s21, 0
      %p41 = por %p39, %p40
      %p42 = scmp.ne.s32.totalorder %s31, %s34
      %p43 = scmp.eq.s32.totalorder %s26, 1
      %p44 = por %p42, %p43
      %p45 = scmp.ne.s32.totalorder %s34, %s35
      %p46 = scmp.eq.s32.totalorder %s26, 0
      %p47 = por %p45, %p46
      %p48 = scmp.ne.s32.totalorder %s34, %s35
      %p49 = scmp.eq.s32.totalorder %s27, 1
      %p50 = por %p48, %p49
      %p52 = scmp.ne.s32.totalorder %s35, %s51
      %p53 = scmp.eq.s32.totalorder %s27, 0
      %p54 = por %p52, %p53
      %s56 = sadd.s32 %s55, 1
      %p59 = scmp.eq.s32.totalorder %s21, 1
      %p60 = scmp.ne.s32.totalorder %s55, %s57
      %p61 = scmp.eq.s32.totalorder %s21, 0
      %p62 = por %p60, %p61
      %p63 = scmp.ne.s32.totalorder %s55, %s57
      %p64 = scmp.eq.s32.totalorder %s26, 1
      %p65 = por %p63, %p64
      %p66 = scmp.ne.s32.totalorder %s57, %s58
      %p67 = scmp.eq.s32.totalorder %s26, 0
      %p68 = por %p66, %p67
      %p69 = scmp.ne.s32.totalorder %s57, %s58
      %p70 = scmp.eq.s32.totalorder %s27, 1
      %p71 = por %p69, %p70
      %p73 = scmp.ne.s32.totalorder %s58, %s72
      %p74 = scmp.eq.s32.totalorder %s27, 0
      %p75 = por %p73, %p74
      %s77 = sadd.s32 %s76, 1
      %p80 = scmp.eq.s32.totalorder %s21, 1
      %p81 = scmp.ne.s32.totalorder %s76, %s78
      %p82 = scmp.eq.s32.totalorder %s21, 0
      %p83 = por %p81, %p82
      %p84 = scmp.ne.s32.totalorder %s76, %s78
      %p85 = scmp.eq.s32.totalorder %s26, 1
      %p86 = por %p84, %p85
      %p87 = scmp.ne.s32.totalorder %s78, %s79
      %p88 = scmp.eq.s32.totalorder %s26, 0
      %p89 = por %p87, %p88
      %p90 = scmp.ne.s32.totalorder %s78, %s79
      %p91 = scmp.eq.s32.totalorder %s27, 1
      %p92 = por %p90, %p91
      %p94 = scmp.ne.s32.totalorder %s79, %s93
      %p95 = scmp.eq.s32.totalorder %s27, 0
      %p96 = por %p94, %p95
      %s98 = sadd.s32 %s97, 1
      %p101 = scmp.eq.s32.totalorder %s21, 1
      %p102 = scmp.ne.s32.totalorder %s97, %s99
      %p103 = scmp.eq.s32.totalorder %s21, 0
      %p104 = por %p102, %p103
      %p105 = scmp.ne.s32.totalorder %s97, %s99
      %p106 = scmp.eq.s32.totalorder %s26, 1
      %p107 = por %p105, %p106
      %p108 = scmp.ne.s32.totalorder %s99, %s100
      %p109 = scmp.eq.s32.totalorder %s26, 0
      %p110 = por %p108, %p109
      %p111 = scmp.ne.s32.totalorder %s99, %s100
      %p112 = scmp.eq.s32.totalorder %s27, 1
      %p113 = por %p111, %p112
      %p115 = scmp.ne.s32.totalorder %s100, %s114
      %p116 = scmp.eq.s32.totalorder %s27, 0
      %p117 = por %p115, %p116
      %s119 = sadd.s32 %s118, 1
      %p122 = scmp.eq.s32.totalorder %s21, 1
      %p123 = scmp.ne.s32.totalorder %s118, %s120
      %p124 = scmp.eq.s32.totalorder %s21, 0
      %p125 = por %p123, %p124
      %p126 = scmp.ne.s32.totalorder %s118, %s120
      %p127 = scmp.eq.s32.totalorder %s26, 1
      %p128 = por %p126, %p127
      %p129 = scmp.ne.s32.totalorder %s120, %s121
      %p130 = scmp.eq.s32.totalorder %s26, 0
      %p131 = por %p129, %p130
      %p132 = scmp.ne.s32.totalorder %s120, %s121
      %p133 = scmp.eq.s32.totalorder %s27, 1
      %p134 = por %p132, %p133
      %p136 = scmp.ne.s32.totalorder %s121, %s135
      %p137 = scmp.eq.s32.totalorder %s27, 0
      %p138 = por %p136, %p137
      %s140 = sadd.s32 %s139, 1
      %p143 = scmp.eq.s32.totalorder %s21, 1
      %p144 = scmp.ne.s32.totalorder %s139, %s141
      %p145 = scmp.eq.s32.totalorder %s21, 0
      %p146 = por %p144, %p145
      %p147 = scmp.ne.s32.totalorder %s139, %s141
      %p148 = scmp.eq.s32.totalorder %s26, 1
      %p149 = por %p147, %p148
      %p150 = scmp.ne.s32.totalorder %s141, %s142
      %p151 = scmp.eq.s32.totalorder %s26, 0
      %p152 = por %p150, %p151
      %p153 = scmp.ne.s32.totalorder %s141, %s142
      %p154 = scmp.eq.s32.totalorder %s27, 1
      %p155 = por %p153, %p154
      %p157 = scmp.ne.s32.totalorder %s142, %s156
      %p158 = scmp.eq.s32.totalorder %s27, 0
      %p159 = por %p157, %p158
      %s161 = sadd.s32 %s160, 1
      %p164 = scmp.eq.s32.totalorder %s21, 1
      %p165 = scmp.ne.s32.totalorder %s160, %s162
      %p166 = scmp.eq.s32.totalorder %s21, 0
      %p167 = por %p165, %p166
      %p168 = scmp.ne.s32.totalorder %s160, %s162
      %p169 = scmp.eq.s32.totalorder %s26, 1
      %p170 = por %p168, %p169
      %p171 = scmp.ne.s32.totalorder %s162, %s163
      %p172 = scmp.eq.s32.totalorder %s26, 0
      %p173 = por %p171, %p172
      %p174 = scmp.ne.s32.totalorder %s162, %s163
      %p175 = scmp.eq.s32.totalorder %s27, 1
      %p176 = por %p174, %p175
      %p178 = scmp.ne.s32.totalorder %s163, %s177
      %p179 = scmp.eq.s32.totalorder %s27, 0
      %p180 = por %p178, %p179
      %s181 = ssub.s32 %s21, %s28
      %p182 = scmp.eq.s32.totalorder %s181, 0
      %s184 = sadd.s32 %s183, 1
      %s185 = scalar_select %p182, %s183, %s184
      %p188 = pneg %p182
      %p189 = scmp.eq.s32.totalorder %s21, 1
      %p190 = por %p188, %p189
      %p191 = scmp.ne.s32.totalorder %s183, %s186
      %p192 = scmp.eq.s32.totalorder %s21, 0
      %p193 = por %p191, %p192
      %p194 = scmp.ne.s32.totalorder %s183, %s186
      %p195 = scmp.eq.s32.totalorder %s26, 1
      %p196 = por %p194, %p195
      %p197 = scmp.ne.s32.totalorder %s186, %s187
      %p198 = scmp.eq.s32.totalorder %s26, 0
      %p199 = por %p197, %p198
      %p200 = scmp.ne.s32.totalorder %s186, %s187
      %p201 = scmp.eq.s32.totalorder %s27, 1
      %p202 = por %p200, %p201
      %p204 = scmp.ne.s32.totalorder %s187, %s203
      %p205 = scmp.eq.s32.totalorder %s27, 0
      %p206 = por %p204, %p205
      %p207 = scmp.le.s32.totalorder 1, %s21
      %p208 = scmp.lt.s32.totalorder %s21, 3
      %p209 = pnand %p207, %p208
      %p210 = pneg %p209
      // Predicated region
      $region9: #{autoencoder_forward.1} parent=5 // pred_check
        _
      $region10: #{autoencoder_forward.1} parent=5 // pred_check_branch
        %212 = sbr.rel (%p209) target = $region12
      $region11: #{autoencoder_forward.1} parent=5 // pred_region
        %s213 = ssub.s32 %s21, 1
        // Predicated region
        $region13: #{autoencoder_forward.1} parent=11 // pred_check
          %p214 = pneg %p68
        $region14: #{autoencoder_forward.1} parent=11 // pred_check_branch
          %216 = sbr.rel (%p214) target = $region16
        $region15: #{autoencoder_forward.1} parent=11 // pred_region
          %s218 = ssub.s32 2048, 2048
          %219 = vsyncadd [#allocation6], %s218
          %s220 = sshll.u32 [#allocation5], 4
          %s221 = int_to_ptr.vmem [resolvable:$true] %s220
          %226 = dma.hbm_to_vmem [thread:$0]  %s1, 2048, %s221, [#allocation6], 64, 64, 4
        $region16: #{autoencoder_forward.1} parent=11 // pred_fallthru
          _
        // Predicated region
        $region17: #{autoencoder_forward.1} parent=11 // pred_check
          %p227 = pneg %p89
        $region18: #{autoencoder_forward.1} parent=11 // pred_check_branch
          %229 = sbr.rel (%p227) target = $region20
        $region19: #{autoencoder_forward.1} parent=11 // pred_region
          _
        $region20: #{autoencoder_forward.1} parent=11 // pred_fallthru
          _
        // Predicated region
        $region21: #{autoencoder_forward.1} parent=11 // pred_check
          %p230 = pneg %p110
        $region22: #{autoencoder_forward.1} parent=11 // pred_check_branch
          %232 = sbr.rel (%p230) target = $region24
        $region23: #{autoencoder_forward.1} parent=11 // pred_region
          %s234 = ssub.s32 1024, 1024
          %235 = vsyncadd [#allocation6], %s234
          %s236 = sshll.u32 [#allocation7], 4
          %s237 = int_to_ptr.vmem [resolvable:$true] %s236
          %242 = dma.hbm_to_vmem [thread:$0]  %s3, 1024, %s237, [#allocation6], 64, 64, 4
        $region24: #{autoencoder_forward.1} parent=11 // pred_fallthru
          _
        // Predicated region
        $region25: #{autoencoder_forward.1} parent=11 // pred_check
          %p243 = pneg %p131
        $region26: #{autoencoder_forward.1} parent=11 // pred_check_branch
          %245 = sbr.rel (%p243) target = $region28
        $region27: #{autoencoder_forward.1} parent=11 // pred_region
          _
        $region28: #{autoencoder_forward.1} parent=11 // pred_fallthru
          _
        // Predicated region
        $region29: #{autoencoder_forward.1} parent=11 // pred_check
          %p246 = pneg %p152
        $region30: #{autoencoder_forward.1} parent=11 // pred_check_branch
          %248 = sbr.rel (%p246) target = $region32
        $region31: #{autoencoder_forward.1} parent=11 // pred_region
          %s250 = ssub.s32 2048, 2048
          %251 = vsyncadd [#allocation9], %s250
          %s252 = sshll.u32 [#allocation8], 4
          %s253 = int_to_ptr.vmem [resolvable:$true] %s252
          %258 = dma.hbm_to_vmem [thread:$0]  %s5, 2048, %s253, [#allocation9], 128, 128, 8
        $region32: #{autoencoder_forward.1} parent=11 // pred_fallthru
          _
        // Predicated region
        $region33: #{autoencoder_forward.1} parent=11 // pred_check
          %p259 = pneg %p173
        $region34: #{autoencoder_forward.1} parent=11 // pred_check_branch
          %261 = sbr.rel (%p259) target = $region36
        $region35: #{autoencoder_forward.1} parent=11 // pred_region
          _
        $region36: #{autoencoder_forward.1} parent=11 // pred_fallthru
          _
      $region12: #{autoencoder_forward.1} parent=5 // pred_fallthru
        _
      %p262 = scmp.lt.s32.totalorder %s21, 2
      // Predicated region
      $region37: #{autoencoder_forward.1} parent=5 // pred_check
        %p263 = pneg %p262
      $region38: #{autoencoder_forward.1} parent=5 // pred_check_branch
        %265 = sbr.rel (%p263) target = $region40
      $region39: #{autoencoder_forward.1} parent=5 // pred_region
        // Predicated region
        $region41: #{autoencoder_forward.1} parent=39 // pred_check
          %p266 = pneg %p41
        $region42: #{autoencoder_forward.1} parent=39 // pred_check_branch
          %268 = sbr.rel (%p266) target = $region44
        $region43: #{autoencoder_forward.1} parent=39 // pred_region
          %s269 = sand.u32 %s31, 1
          %s270 = scalar_lea.sflag [#allocation3], %s269
          %s271 = sand.u32 %s31, 1
          %s272 = smul.addr %s271, 208
          %s273 = scalar_lea.vmem [#allocation2], %s272
          %s274 = smul.u32 13, %s21
          %s275 = ssub.s32 25, %s274
          %p276 = scmp.lt.s32.totalorder %s275, 13
          %s277 = scalar_select %p276, %s275, 13
          %s278 = smul.u32 128, %s277
          %s279 = smul.u32 %s278, 2
          %s281 = ssub.s32 3328, %s279
          %282 = vsyncadd %s270, %s281
          %p283 = scmp.ne.s32.totalorder 0, %s279
          %s284 = smul.addr %s274, 2
          %s285 = smul.addr %s284, 128
          %s286 = scalar_lea.hbm %s0, %s285
          %s287 = smul.u32 16, %s277
          %s288 = sshll.u32 %s273, 4
          %s289 = int_to_ptr.vmem [resolvable:$true] %s288
          %s290 = sshll.u32 %s287, 4
          %294 = dma.hbm_to_vmem [thread:$0]  (%p283), %s286, %s290, %s289, %s270, 256, 256, 16
        $region44: #{autoencoder_forward.1} parent=39 // pred_fallthru
          _
      $region40: #{autoencoder_forward.1} parent=5 // pred_fallthru
        _
      %p295 = scmp.le.s32.totalorder 1, %s21
      %p296 = scmp.lt.s32.totalorder %s21, 3
      %p297 = pnand %p295, %p296
      %p298 = pneg %p297
      // Predicated region
      $region45: #{autoencoder_forward.1} parent=5 // pred_check
        _
      $region46: #{autoencoder_forward.1} parent=5 // pred_check_branch
        %300 = sbr.rel (%p297) target = $region48
      $region47: #{autoencoder_forward.1} parent=5 // pred_region
        %s301 = ssub.s32 %s21, 1
        %s302 = sand.u32 %s34, 1
        %s303 = scalar_lea.sflag [#allocation3], %s302
        %s304 = sand.u32 %s34, 1
        %s305 = smul.addr %s304, 208
        %s306 = scalar_lea.vmem [#allocation2], %s305
        // Predicated region
        $region49: #{autoencoder_forward.1} parent=47 // pred_check
          %p307 = pneg %p47
        $region50: #{autoencoder_forward.1} parent=47 // pred_check_branch
          %309 = sbr.rel (%p307) target = $region52
        $region51: #{autoencoder_forward.1} parent=47 // pred_region
          %310 = dma.done %s303, 3328
        $region52: #{autoencoder_forward.1} parent=47 // pred_fallthru
          _
        // Predicated region
        $region53: #{autoencoder_forward.1} parent=47 // pred_check
          %p311 = pneg %p68
        $region54: #{autoencoder_forward.1} parent=47 // pred_check_branch
          %313 = sbr.rel (%p311) target = $region56
        $region55: #{autoencoder_forward.1} parent=47 // pred_region
          %314 = dma.done [#allocation6], 2048
        $region56: #{autoencoder_forward.1} parent=47 // pred_fallthru
          _
        // Predicated region
        $region57: #{autoencoder_forward.1} parent=47 // pred_check
          %p315 = pneg %p110
        $region58: #{autoencoder_forward.1} parent=47 // pred_check_branch
          %317 = sbr.rel (%p315) target = $region60
        $region59: #{autoencoder_forward.1} parent=47 // pred_region
          %318 = dma.done [#allocation6], 1024
        $region60: #{autoencoder_forward.1} parent=47 // pred_fallthru
          _
        // Predicated region
        $region61: #{autoencoder_forward.1} parent=47 // pred_check
          %p319 = pneg %p152
        $region62: #{autoencoder_forward.1} parent=47 // pred_check_branch
          %321 = sbr.rel (%p319) target = $region64
        $region63: #{autoencoder_forward.1} parent=47 // pred_region
          %322 = dma.done [#allocation9], 2048
        $region64: #{autoencoder_forward.1} parent=47 // pred_fallthru
          _
        %s323 = sand.u32 %s34, 1
        %s324 = scalar_lea.sflag [#allocation3], %s323
        %s325 = sand.u32 %s34, 1
        %s326 = smul.addr %s325, 208
        %s327 = scalar_lea.vmem [#allocation2], %s326
        %p328 = pneg %p47
        %p329 = pneg %p44
        %p330 = pneg %p68
        %p331 = pneg %p65
        %p332 = pneg %p89
        %p333 = pneg %p86
        %p334 = pneg %p110
        %p335 = pneg %p107
        %p336 = pneg %p131
        %p337 = pneg %p128
        %p338 = pneg %p152
        %p339 = pneg %p149
        %p340 = pneg %p173
        %p341 = pneg %p170
        %p342 = pneg %p199
        %p343 = pneg %p196
        %s344 = sand.u32 %s186, 1
        %s345 = scalar_lea.sflag [#allocation4], %s344
        %s346 = sand.u32 %s186, 1
        %s347 = smul.addr %s346, 104
        %s348 = scalar_lea.vmem [#allocation10], %s347
        %s349 = smul.u32 13, %s26
        %s350 = ssub.s32 25, %s349
        %p351 = scmp.lt.s32.totalorder %s350, 13
        %s352 = scalar_select %p351, %s350, 13
        %s353 = smul.u32 128, %s352
        %s354 = smul.u32 %s353, 2
        %s355 = smul.u32 13, %s26
        %s356 = ssub.s32 25, %s355
        %p357 = scmp.lt.s32.totalorder %s356, 13
        %s358 = scalar_select %p357, %s356, 13
        %s359 = smul.u32 64, %s358
        %s360 = smul.u32 %s359, 2
        %v362 = vld [vmem:[%s306] sm:$0xff]
        %v363 = vld [vmem:[%s306 + $0x8] sm:$0xff]
        %v364 = vld [vmem:[%s306 + $0x10] sm:$0xff]
        %v365 = vld [vmem:[%s306 + $0x18] sm:$0xff]
        %v366 = vld [vmem:[%s306 + $0x20] sm:$0xff]
        %v367 = vld [vmem:[%s306 + $0x28] sm:$0xff]
        %v368 = vld [vmem:[%s306 + $0x30] sm:$0xff]
        %v369 = vld [vmem:[%s306 + $0x38] sm:$0xff]
        %v370 = vld [vmem:[%s306 + $0x40] sm:$0xff]
        %v371 = vld [vmem:[%s306 + $0x48] sm:$0xff]
        %v372 = vld [vmem:[%s306 + $0x50] sm:$0xff]
        %v373 = vld [vmem:[%s306 + $0x58] sm:$0xff]
        %v374 = vld [vmem:[%s306 + $0x60] sm:$0xff]
        %v375 = vld [vmem:[%s306 + $0x68] sm:$0xff]
        %v376 = vld [vmem:[%s306 + $0x70] sm:$0xff]
        %v377 = vld [vmem:[%s306 + $0x78] sm:$0xff]
        %v378 = vld [vmem:[%s306 + $0x80] sm:$0xff]
        %v379 = vld [vmem:[%s306 + $0x88] sm:$0xff]
        %v380 = vld [vmem:[%s306 + $0x90] sm:$0xff]
        %v381 = vld [vmem:[%s306 + $0x98] sm:$0xff]
        %v382 = vld [vmem:[%s306 + $0xa0] sm:$0xff]
        %v383 = vld [vmem:[%s306 + $0xa8] sm:$0xff]
        %v384 = vld [vmem:[%s306 + $0xb0] sm:$0xff]
        %v385 = vld [vmem:[%s306 + $0xb8] sm:$0xff]
        %v386 = vld [vmem:[%s306 + $0xc0] sm:$0xff]
        %v387 = vld [vmem:[%s306 + $0xc8] sm:$0xff]
        %v388 = vpack.c.bf16 %v364, %v362
        %v389 = vpack.c.bf16 %v365, %v363
        %v390 = vpack.c.bf16 %v368, %v366
        %v391 = vpack.c.bf16 %v369, %v367
        %v392 = vpack.c.bf16 %v372, %v370
        %v393 = vpack.c.bf16 %v373, %v371
        %v394 = vpack.c.bf16 %v376, %v374
        %v395 = vpack.c.bf16 %v377, %v375
        %v396 = vpack.c.bf16 %v380, %v378
        %v397 = vpack.c.bf16 %v381, %v379
        %v398 = vpack.c.bf16 %v384, %v382
        %v399 = vpack.c.bf16 %v385, %v383
        %v400 = vpack.c.bf16 %v386, %v386
        %v401 = vpack.c.bf16 %v387, %v387
        %v402 = vld [vmem:[#allocation5] sm:$0xf]
        %v403 = vld [vmem:[#allocation5 + $0x4] sm:$0xf]
        %v404 = vld [vmem:[#allocation5 + $0x8] sm:$0xf]
        %v405 = vld [vmem:[#allocation5 + $0xc] sm:$0xf]
        %v406 = vld [vmem:[#allocation5 + $0x10] sm:$0xf]
        %v407 = vld [vmem:[#allocation5 + $0x14] sm:$0xf]
        %v408 = vld [vmem:[#allocation5 + $0x18] sm:$0xf]
        %v409 = vld [vmem:[#allocation5 + $0x1c] sm:$0xf]
        %v410 = vld [vmem:[#allocation5 + $0x20] sm:$0xf]
        %v411 = vld [vmem:[#allocation5 + $0x24] sm:$0xf]
        %v412 = vld [vmem:[#allocation5 + $0x28] sm:$0xf]
        %v413 = vld [vmem:[#allocation5 + $0x2c] sm:$0xf]
        %v414 = vld [vmem:[#allocation5 + $0x30] sm:$0xf]
        %v415 = vld [vmem:[#allocation5 + $0x34] sm:$0xf]
        %v416 = vld [vmem:[#allocation5 + $0x38] sm:$0xf]
        %v417 = vld [vmem:[#allocation5 + $0x3c] sm:$0xf]
        %v418 = vld [vmem:[#allocation5 + $0x40] sm:$0xf]
        %v419 = vld [vmem:[#allocation5 + $0x44] sm:$0xf]
        %v420 = vld [vmem:[#allocation5 + $0x48] sm:$0xf]
        %v421 = vld [vmem:[#allocation5 + $0x4c] sm:$0xf]
        %v422 = vld [vmem:[#allocation5 + $0x50] sm:$0xf]
        %v423 = vld [vmem:[#allocation5 + $0x54] sm:$0xf]
        %v424 = vld [vmem:[#allocation5 + $0x58] sm:$0xf]
        %v425 = vld [vmem:[#allocation5 + $0x5c] sm:$0xf]
        %v426 = vld [vmem:[#allocation5 + $0x60] sm:$0xf]
        %v427 = vld [vmem:[#allocation5 + $0x64] sm:$0xf]
        %v428 = vld [vmem:[#allocation5 + $0x68] sm:$0xf]
        %v429 = vld [vmem:[#allocation5 + $0x6c] sm:$0xf]
        %v430 = vld [vmem:[#allocation5 + $0x70] sm:$0xf]
        %v431 = vld [vmem:[#allocation5 + $0x74] sm:$0xf]
        %v432 = vld [vmem:[#allocation5 + $0x78] sm:$0xf]
        %v433 = vld [vmem:[#allocation5 + $0x7c] sm:$0xf]
        %v434 = vld [vmem:[%s2] sm:$0x1]
        %v436 = vlaneseq
        %v437 = vshrl.u32 %v436, 7
        %v438 = vsub.s32 0, %v437
        %v439 = vrot.slane %v434, %v438
        %v473 = vunpack.c.l.b16 %v402
        %v474 = vunpack.c.l.b16 %v403
        %v475 = vunpack.c.l.b16 %v404
        %v476 = vunpack.c.l.b16 %v405
        %v477 = vunpack.c.l.b16 %v406
        %v478 = vunpack.c.l.b16 %v407
        %v479 = vunpack.c.l.b16 %v408
        %v480 = vunpack.c.l.b16 %v409
        %v481 = vunpack.c.l.b16 %v410
        %v482 = vunpack.c.l.b16 %v411
        %v483 = vunpack.c.l.b16 %v412
        %v484 = vunpack.c.l.b16 %v413
        %v485 = vunpack.c.l.b16 %v414
        %v486 = vunpack.c.l.b16 %v415
        %v487 = vunpack.c.l.b16 %v416
        %v488 = vunpack.c.l.b16 %v417
        %v489 = vunpack.c.l.b16 %v418
        %v490 = vunpack.c.l.b16 %v419
        %v491 = vunpack.c.l.b16 %v420
        %v492 = vunpack.c.l.b16 %v421
        %v493 = vunpack.c.l.b16 %v422
        %v494 = vunpack.c.l.b16 %v423
        %v495 = vunpack.c.l.b16 %v424
        %v496 = vunpack.c.l.b16 %v425
        %v497 = vunpack.c.l.b16 %v426
        %v498 = vunpack.c.l.b16 %v427
        %v499 = vunpack.c.l.b16 %v428
        %v500 = vunpack.c.l.b16 %v429
        %v501 = vunpack.c.l.b16 %v430
        %v502 = vunpack.c.l.b16 %v431
        %v503 = vunpack.c.l.b16 %v432
        %v504 = vunpack.c.l.b16 %v433
        %v505 = vpack.c.b16 %v474, %v473
        %v506 = vpack.c.b16 %v476, %v475
        %v507 = vpack.c.b16 %v478, %v477
        %v508 = vpack.c.b16 %v480, %v479
        %v509 = vpack.c.b16 %v482, %v481
        %v510 = vpack.c.b16 %v484, %v483
        %v511 = vpack.c.b16 %v486, %v485
        %v512 = vpack.c.b16 %v488, %v487
        %v513 = vpack.c.b16 %v490, %v489
        %v514 = vpack.c.b16 %v492, %v491
        %v515 = vpack.c.b16 %v494, %v493
        %v516 = vpack.c.b16 %v496, %v495
        %v517 = vpack.c.b16 %v498, %v497
        %v518 = vpack.c.b16 %v500, %v499
        %v519 = vpack.c.b16 %v502, %v501
        %v520 = vpack.c.b16 %v504, %v503
        %537 = vmatprep.subr.bf16.mxu0 0
        %538 = vmatpush1.bf16.msra.mxu0 %v505
        %539 = vmatprep.subr.bf16.mxu0 0
        %540 = vmatpush1.bf16.msra.mxu0 %v506
        %541 = vmatprep.subr.bf16.mxu0 0
        %542 = vmatpush1.bf16.msra.mxu0 %v507
        %543 = vmatprep.subr.bf16.mxu0 0
        %544 = vmatpush1.bf16.msra.mxu0 %v508
        %545 = vmatprep.subr.bf16.mxu0 0
        %546 = vmatpush1.bf16.msra.mxu0 %v509
        %547 = vmatprep.subr.bf16.mxu0 0
        %548 = vmatpush1.bf16.msra.mxu0 %v510
        %549 = vmatprep.subr.bf16.mxu0 0
        %550 = vmatpush1.bf16.msra.mxu0 %v511
        %551 = vmatprep.subr.bf16.mxu0 0
        %552 = vmatpush1.bf16.msra.mxu0 %v512
        %553 = vmatprep.subr.bf16.mxu0 0
        %554 = vmatpush1.bf16.msra.mxu0 %v513
        %555 = vmatprep.subr.bf16.mxu0 0
        %556 = vmatpush1.bf16.msra.mxu0 %v514
        %557 = vmatprep.subr.bf16.mxu0 0
        %558 = vmatpush1.bf16.msra.mxu0 %v515
        %559 = vmatprep.subr.bf16.mxu0 0
        %560 = vmatpush1.bf16.msra.mxu0 %v516
        %561 = vmatprep.subr.bf16.mxu0 0
        %562 = vmatpush1.bf16.msra.mxu0 %v517
        %563 = vmatprep.subr.bf16.mxu0 0
        %564 = vmatpush1.bf16.msra.mxu0 %v518
        %565 = vmatprep.subr.bf16.mxu0 0
        %566 = vmatpush1.bf16.msra.mxu0 %v519
        %567 = vmatprep.subr.bf16.mxu0 0
        %568 = vmatpush1.bf16.msra.mxu0 %v520
        %569 = vmatprep.mubr.bf16.mxu0 %v389
        %570 = vmatmul.mubr.bf16.gmra.mrb[0].mxu0 %v388
        %v571 = vpop.f32.mrb[0].mxu0
        %v572 = vadd.f32 %v439, %v571
        %v573 = vpop.f32.mrb[0].mxu0
        %v574 = vpop.f32.mrb[0].mxu0
        %v575 = vadd.f32 %v439, %v574
        %v576 = vpop.f32.mrb[0].mxu0
        %577 = vmatprep.mubr.bf16.mxu0 %v391
        %578 = vmatmul.mubr.bf16.gmra.mrb[0].mxu0 %v390
        %v579 = vpop.f32.mrb[0].mxu0
        %v580 = vadd.f32 %v439, %v579
        %v581 = vpop.f32.mrb[0].mxu0
        %v582 = vpop.f32.mrb[0].mxu0
        %v583 = vadd.f32 %v439, %v582
        %v584 = vpop.f32.mrb[0].mxu0
        %585 = vmatprep.mubr.bf16.mxu0 %v393
        %586 = vmatmul.mubr.bf16.gmra.mrb[0].mxu0 %v392
        %v587 = vpop.f32.mrb[0].mxu0
        %v588 = vadd.f32 %v439, %v587
        %v589 = vpop.f32.mrb[0].mxu0
        %v590 = vpop.f32.mrb[0].mxu0
        %v591 = vadd.f32 %v439, %v590
        %v592 = vpop.f32.mrb[0].mxu0
        %593 = vmatprep.mubr.bf16.mxu0 %v395
        %594 = vmatmul.mubr.bf16.gmra.mrb[0].mxu0 %v394
        %v595 = vpop.f32.mrb[0].mxu0
        %v596 = vadd.f32 %v439, %v595
        %v597 = vpop.f32.mrb[0].mxu0
        %v598 = vpop.f32.mrb[0].mxu0
        %v599 = vadd.f32 %v439, %v598
        %v600 = vpop.f32.mrb[0].mxu0
        %601 = vmatprep.mubr.bf16.mxu0 %v397
        %602 = vmatmul.mubr.bf16.gmra.mrb[0].mxu0 %v396
        %v603 = vpop.f32.mrb[0].mxu0
        %v604 = vadd.f32 %v439, %v603
        %v605 = vpop.f32.mrb[0].mxu0
        %v606 = vpop.f32.mrb[0].mxu0
        %v607 = vadd.f32 %v439, %v606
        %v608 = vpop.f32.mrb[0].mxu0
        %609 = vmatprep.mubr.bf16.mxu0 %v399
        %610 = vmatmul.mubr.bf16.gmra.mrb[0].mxu0 %v398
        %v611 = vpop.f32.mrb[0].mxu0
        %v612 = vadd.f32 %v439, %v611
        %v613 = vpop.f32.mrb[0].mxu0
        %v614 = vpop.f32.mrb[0].mxu0
        %v615 = vadd.f32 %v439, %v614
        %v616 = vpop.f32.mrb[0].mxu0
        %617 = vmatprep.mubr.bf16.mxu0 %v401
        %618 = vmatmul.mubr.bf16.gmra.mrb[0].mxu0 %v400
        %v619 = vpop.f32.mrb[0].mxu0
        %v620 = vadd.f32 %v439, %v619
        %v621 = vpop.f32.mrb[0].mxu0
        %v622 = vpop.f32.mrb[0].mxu0
        %v623 = vpop.f32.mrb[0].mxu0
        %624 = vdwg.mxu0
        %v625 = vmul.f32 %v572, 0.5
        %v626 = vmul.f32 %v575, 0.5
        %v627 = vmul.f32 %v580, 0.5
        %v628 = vmul.f32 %v583, 0.5
        %v629 = vmul.f32 %v588, 0.5
        %v630 = vmul.f32 %v591, 0.5
        %v631 = vmul.f32 %v596, 0.5
        %v632 = vmul.f32 %v599, 0.5
        %v633 = vmul.f32 %v604, 0.5
        %v634 = vmul.f32 %v607, 0.5
        %v635 = vmul.f32 %v612, 0.5
        %v636 = vmul.f32 %v615, 0.5
        %v637 = vmul.f32 %v620, 0.5
        %v638 = vtanh.pop %v625
        %v639 = vtanh.pop %v626
        %v640 = vtanh.pop %v627
        %v641 = vtanh.pop %v628
        %v642 = vtanh.pop %v629
        %v643 = vtanh.pop %v630
        %v644 = vtanh.pop %v631
        %v645 = vtanh.pop %v632
        %v646 = vtanh.pop %v633
        %v647 = vtanh.pop %v634
        %v648 = vtanh.pop %v635
        %v649 = vtanh.pop %v636
        %v650 = vtanh.pop %v637
        %v651 = vmul.f32 %v638, 0.5
        %v652 = vmul.f32 %v639, 0.5
        %v653 = vmul.f32 %v640, 0.5
        %v654 = vmul.f32 %v641, 0.5
        %v655 = vmul.f32 %v642, 0.5
        %v656 = vmul.f32 %v643, 0.5
        %v657 = vmul.f32 %v644, 0.5
        %v658 = vmul.f32 %v645, 0.5
        %v659 = vmul.f32 %v646, 0.5
        %v660 = vmul.f32 %v647, 0.5
        %v661 = vmul.f32 %v648, 0.5
        %v662 = vmul.f32 %v649, 0.5
        %v663 = vmul.f32 %v650, 0.5
        %v664 = vadd.f32 %v651, 0.5
        %v665 = vadd.f32 %v652, 0.5
        %v666 = vadd.f32 %v653, 0.5
        %v667 = vadd.f32 %v654, 0.5
        %v668 = vadd.f32 %v655, 0.5
        %v669 = vadd.f32 %v656, 0.5
        %v670 = vadd.f32 %v657, 0.5
        %v671 = vadd.f32 %v658, 0.5
        %v672 = vadd.f32 %v659, 0.5
        %v673 = vadd.f32 %v660, 0.5
        %v674 = vadd.f32 %v661, 0.5
        %v675 = vadd.f32 %v662, 0.5
        %v676 = vadd.f32 %v663, 0.5
        %v677 = vpack.c.bf16 %v665, %v664
        %v678 = vpack.c.bf16 %v667, %v666
        %v679 = vpack.c.bf16 %v669, %v668
        %v680 = vpack.c.bf16 %v671, %v670
        %v681 = vpack.c.bf16 %v673, %v672
        %v682 = vpack.c.bf16 %v675, %v674
        %v683 = vpack.c.bf16 %v676, %v676
        %v684 = vld [vmem:[#allocation7] sm:$0xf]
        %v685 = vld [vmem:[#allocation7 + $0x4] sm:$0xf]
        %v686 = vld [vmem:[#allocation7 + $0x8] sm:$0xf]
        %v687 = vld [vmem:[#allocation7 + $0xc] sm:$0xf]
        %v688 = vld [vmem:[#allocation7 + $0x10] sm:$0xf]
        %v689 = vld [vmem:[#allocation7 + $0x14] sm:$0xf]
        %v690 = vld [vmem:[#allocation7 + $0x18] sm:$0xf]
        %v691 = vld [vmem:[#allocation7 + $0x1c] sm:$0xf]
        %v692 = vld [vmem:[#allocation7 + $0x20] sm:$0xf]
        %v693 = vld [vmem:[#allocation7 + $0x24] sm:$0xf]
        %v694 = vld [vmem:[#allocation7 + $0x28] sm:$0xf]
        %v695 = vld [vmem:[#allocation7 + $0x2c] sm:$0xf]
        %v696 = vld [vmem:[#allocation7 + $0x30] sm:$0xf]
        %v697 = vld [vmem:[#allocation7 + $0x34] sm:$0xf]
        %v698 = vld [vmem:[#allocation7 + $0x38] sm:$0xf]
        %v699 = vld [vmem:[#allocation7 + $0x3c] sm:$0xf]
        %v700 = vld [vmem:[%s4] sm:$0x1]
        %v702 = vlaneseq
        %v703 = vshrl.u32 %v702, 7
        %v704 = vsub.s32 0, %v703
        %v705 = vrot.slane %v700, %v704
        %v723 = vunpack.c.l.b16 %v684
        %v724 = vunpack.c.l.b16 %v685
        %v725 = vunpack.c.l.b16 %v686
        %v726 = vunpack.c.l.b16 %v687
        %v727 = vunpack.c.l.b16 %v688
        %v728 = vunpack.c.l.b16 %v689
        %v729 = vunpack.c.l.b16 %v690
        %v730 = vunpack.c.l.b16 %v691
        %v731 = vunpack.c.l.b16 %v692
        %v732 = vunpack.c.l.b16 %v693
        %v733 = vunpack.c.l.b16 %v694
        %v734 = vunpack.c.l.b16 %v695
        %v735 = vunpack.c.l.b16 %v696
        %v736 = vunpack.c.l.b16 %v697
        %v737 = vunpack.c.l.b16 %v698
        %v738 = vunpack.c.l.b16 %v699
        %v739 = vpack.c.b16 %v724, %v723
        %v740 = vpack.c.b16 %v726, %v725
        %v741 = vpack.c.b16 %v728, %v727
        %v742 = vpack.c.b16 %v730, %v729
        %v743 = vpack.c.b16 %v732, %v731
        %v744 = vpack.c.b16 %v734, %v733
        %v745 = vpack.c.b16 %v736, %v735
        %v746 = vpack.c.b16 %v738, %v737
        %755 = vmatprep.subr.bf16.mxu0 0
        %756 = vmatpush1.bf16.msra.mxu0 %v739
        %757 = vmatprep.subr.bf16.mxu0 0
        %758 = vmatpush1.bf16.msra.mxu0 %v740
        %759 = vmatprep.subr.bf16.mxu0 0
        %760 = vmatpush1.bf16.msra.mxu0 %v741
        %761 = vmatprep.subr.bf16.mxu0 0
        %762 = vmatpush1.bf16.msra.mxu0 %v742
        %763 = vmatprep.subr.bf16.mxu0 0
        %764 = vmatpush1.bf16.msra.mxu0 %v743
        %765 = vmatprep.subr.bf16.mxu0 0
        %766 = vmatpush1.bf16.msra.mxu0 %v744
        %767 = vmatprep.subr.bf16.mxu0 0
        %768 = vmatpush1.bf16.msra.mxu0 %v745
        %769 = vmatprep.subr.bf16.mxu0 0
        %770 = vmatpush1.bf16.msra.mxu0 %v746
        %771 = vmatprep.subr.bf16.mxu0 0
        %772 = vmatpush1.bf16.msra.mxu0 0
        %773 = vmatprep.subr.bf16.mxu0 0
        %774 = vmatpush1.bf16.msra.mxu0 0
        %775 = vmatprep.subr.bf16.mxu0 0
        %776 = vmatpush1.bf16.msra.mxu0 0
        %777 = vmatprep.subr.bf16.mxu0 0
        %778 = vmatpush1.bf16.msra.mxu0 0
        %779 = vmatprep.subr.bf16.mxu0 0
        %780 = vmatpush1.bf16.msra.mxu0 0
        %781 = vmatprep.subr.bf16.mxu0 0
        %782 = vmatpush1.bf16.msra.mxu0 0
        %783 = vmatprep.subr.bf16.mxu0 0
        %784 = vmatpush1.bf16.msra.mxu0 0
        %785 = vmatprep.subr.bf16.mxu0 0
        %786 = vmatpush1.bf16.msra.mxu0 0
        %787 = vmatprep.mubr.bf16.mxu0 0
        %788 = vmatmul.mubr.bf16.gmra.mrb[0].mxu0 %v677
        %v789 = vpop.f32.mrb[0].mxu0
        %v790 = vadd.f32 %v705, %v789
        %v791 = vpop.f32.mrb[0].mxu0
        %v792 = vpop.f32.mrb[0].mxu0
        %v793 = vadd.f32 %v705, %v792
        %v794 = vpop.f32.mrb[0].mxu0
        %795 = vmatprep.mubr.bf16.mxu0 0
        %796 = vmatmul.mubr.bf16.gmra.mrb[0].mxu0 %v678
        %v797 = vpop.f32.mrb[0].mxu0
        %v798 = vadd.f32 %v705, %v797
        %v799 = vpop.f32.mrb[0].mxu0
        %v800 = vpop.f32.mrb[0].mxu0
        %v801 = vadd.f32 %v705, %v800
        %v802 = vpop.f32.mrb[0].mxu0
        %803 = vmatprep.mubr.bf16.mxu0 0
        %804 = vmatmul.mubr.bf16.gmra.mrb[0].mxu0 %v679
        %v805 = vpop.f32.mrb[0].mxu0
        %v806 = vadd.f32 %v705, %v805
        %v807 = vpop.f32.mrb[0].mxu0
        %v808 = vpop.f32.mrb[0].mxu0
        %v809 = vadd.f32 %v705, %v808
        %v810 = vpop.f32.mrb[0].mxu0
        %811 = vmatprep.mubr.bf16.mxu0 0
        %812 = vmatmul.mubr.bf16.gmra.mrb[0].mxu0 %v680
        %v813 = vpop.f32.mrb[0].mxu0
        %v814 = vadd.f32 %v705, %v813
        %v815 = vpop.f32.mrb[0].mxu0
        %v816 = vpop.f32.mrb[0].mxu0
        %v817 = vadd.f32 %v705, %v816
        %v818 = vpop.f32.mrb[0].mxu0
        %819 = vmatprep.mubr.bf16.mxu0 0
        %820 = vmatmul.mubr.bf16.gmra.mrb[0].mxu0 %v681
        %v821 = vpop.f32.mrb[0].mxu0
        %v822 = vadd.f32 %v705, %v821
        %v823 = vpop.f32.mrb[0].mxu0
        %v824 = vpop.f32.mrb[0].mxu0
        %v825 = vadd.f32 %v705, %v824
        %v826 = vpop.f32.mrb[0].mxu0
        %827 = vmatprep.mubr.bf16.mxu0 0
        %828 = vmatmul.mubr.bf16.gmra.mrb[0].mxu0 %v682
        %v829 = vpop.f32.mrb[0].mxu0
        %v830 = vadd.f32 %v705, %v829
        %v831 = vpop.f32.mrb[0].mxu0
        %v832 = vpop.f32.mrb[0].mxu0
        %v833 = vadd.f32 %v705, %v832
        %v834 = vpop.f32.mrb[0].mxu0
        %835 = vmatprep.mubr.bf16.mxu0 0
        %836 = vmatmul.mubr.bf16.gmra.mrb[0].mxu0 %v683
        %v837 = vpop.f32.mrb[0].mxu0
        %v838 = vadd.f32 %v705, %v837
        %v839 = vpop.f32.mrb[0].mxu0
        %v840 = vpop.f32.mrb[0].mxu0
        %v841 = vpop.f32.mrb[0].mxu0
        %842 = vdwg.mxu0
        %v843 = vmul.f32 %v790, 0.5
        %v844 = vmul.f32 %v793, 0.5
        %v845 = vmul.f32 %v798, 0.5
        %v846 = vmul.f32 %v801, 0.5
        %v847 = vmul.f32 %v806, 0.5
        %v848 = vmul.f32 %v809, 0.5
        %v849 = vmul.f32 %v814, 0.5
        %v850 = vmul.f32 %v817, 0.5
        %v851 = vmul.f32 %v822, 0.5
        %v852 = vmul.f32 %v825, 0.5
        %v853 = vmul.f32 %v830, 0.5
        %v854 = vmul.f32 %v833, 0.5
        %v855 = vmul.f32 %v838, 0.5
        %v856 = vtanh.pop %v843
        %v857 = vtanh.pop %v844
        %v858 = vtanh.pop %v845
        %v859 = vtanh.pop %v846
        %v860 = vtanh.pop %v847
        %v861 = vtanh.pop %v848
        %v862 = vtanh.pop %v849
        %v863 = vtanh.pop %v850
        %v864 = vtanh.pop %v851
        %v865 = vtanh.pop %v852
        %v866 = vtanh.pop %v853
        %v867 = vtanh.pop %v854
        %v868 = vtanh.pop %v855
        %v869 = vmul.f32 %v856, 0.5
        %v870 = vmul.f32 %v857, 0.5
        %v871 = vmul.f32 %v858, 0.5
        %v872 = vmul.f32 %v859, 0.5
        %v873 = vmul.f32 %v860, 0.5
        %v874 = vmul.f32 %v861, 0.5
        %v875 = vmul.f32 %v862, 0.5
        %v876 = vmul.f32 %v863, 0.5
        %v877 = vmul.f32 %v864, 0.5
        %v878 = vmul.f32 %v865, 0.5
        %v879 = vmul.f32 %v866, 0.5
        %v880 = vmul.f32 %v867, 0.5
        %v881 = vmul.f32 %v868, 0.5
        %v882 = vadd.f32 %v869, 0.5
        %v883 = vadd.f32 %v870, 0.5
        %v884 = vadd.f32 %v871, 0.5
        %v885 = vadd.f32 %v872, 0.5
        %v886 = vadd.f32 %v873, 0.5
        %v887 = vadd.f32 %v874, 0.5
        %v888 = vadd.f32 %v875, 0.5
        %v889 = vadd.f32 %v876, 0.5
        %v890 = vadd.f32 %v877, 0.5
        %v891 = vadd.f32 %v878, 0.5
        %v892 = vadd.f32 %v879, 0.5
        %v893 = vadd.f32 %v880, 0.5
        %v894 = vadd.f32 %v881, 0.5
        %v895 = vpack.c.bf16 %v883, %v882
        %v896 = vpack.c.bf16 %v885, %v884
        %v897 = vpack.c.bf16 %v887, %v886
        %v898 = vpack.c.bf16 %v889, %v888
        %v899 = vpack.c.bf16 %v891, %v890
        %v900 = vpack.c.bf16 %v893, %v892
        %v901 = vpack.c.bf16 %v894, %v894
        %v902 = vld [vmem:[#allocation8] sm:$0xff]
        %v903 = vld [vmem:[#allocation8 + $0x8] sm:$0xff]
        %v904 = vld [vmem:[#allocation8 + $0x10] sm:$0xff]
        %v905 = vld [vmem:[#allocation8 + $0x18] sm:$0xff]
        %v906 = vld [vmem:[#allocation8 + $0x20] sm:$0xff]
        %v907 = vld [vmem:[#allocation8 + $0x28] sm:$0xff]
        %v908 = vld [vmem:[#allocation8 + $0x30] sm:$0xff]
        %v909 = vld [vmem:[#allocation8 + $0x38] sm:$0xff]
        %v910 = vld [vmem:[#allocation8 + $0x40] sm:$0xff]
        %v911 = vld [vmem:[#allocation8 + $0x48] sm:$0xff]
        %v912 = vld [vmem:[#allocation8 + $0x50] sm:$0xff]
        %v913 = vld [vmem:[#allocation8 + $0x58] sm:$0xff]
        %v914 = vld [vmem:[#allocation8 + $0x60] sm:$0xff]
        %v915 = vld [vmem:[#allocation8 + $0x68] sm:$0xff]
        %v916 = vld [vmem:[#allocation8 + $0x70] sm:$0xff]
        %v917 = vld [vmem:[#allocation8 + $0x78] sm:$0xff]
        %v918 = vld [vmem:[%s6] sm:$0x3]
        %v920 = vlaneseq
        %v921 = vshrl.u32 %v920, 7
        %v922 = vsub.s32 0, %v921
        %v923 = vrot.slane %v918, %v922
        %v924 = vlaneseq
        %v925 = vshrl.u32 %v924, 7
        %v926 = vsub.s32 1, %v925
        %v927 = vrot.slane %v918, %v926
        %v946 = vunpack.c.l.b16 %v902
        %v947 = vunpack.c.h.b16 %v902
        %v948 = vunpack.c.l.b16 %v903
        %v949 = vunpack.c.h.b16 %v903
        %v950 = vunpack.c.l.b16 %v904
        %v951 = vunpack.c.h.b16 %v904
        %v952 = vunpack.c.l.b16 %v905
        %v953 = vunpack.c.h.b16 %v905
        %v954 = vunpack.c.l.b16 %v906
        %v955 = vunpack.c.h.b16 %v906
        %v956 = vunpack.c.l.b16 %v907
        %v957 = vunpack.c.h.b16 %v907
        %v958 = vunpack.c.l.b16 %v908
        %v959 = vunpack.c.h.b16 %v908
        %v960 = vunpack.c.l.b16 %v909
        %v961 = vunpack.c.h.b16 %v909
        %v962 = vunpack.c.l.b16 %v910
        %v963 = vunpack.c.h.b16 %v910
        %v964 = vunpack.c.l.b16 %v911
        %v965 = vunpack.c.h.b16 %v911
        %v966 = vunpack.c.l.b16 %v912
        %v967 = vunpack.c.h.b16 %v912
        %v968 = vunpack.c.l.b16 %v913
        %v969 = vunpack.c.h.b16 %v913
        %v970 = vunpack.c.l.b16 %v914
        %v971 = vunpack.c.h.b16 %v914
        %v972 = vunpack.c.l.b16 %v915
        %v973 = vunpack.c.h.b16 %v915
        %v974 = vunpack.c.l.b16 %v916
        %v975 = vunpack.c.h.b16 %v916
        %v976 = vunpack.c.l.b16 %v917
        %v977 = vunpack.c.h.b16 %v917
        %v978 = vpack.c.b16 %v948, %v946
        %v979 = vpack.c.b16 %v949, %v947
        %v980 = vpack.c.b16 %v952, %v950
        %v981 = vpack.c.b16 %v953, %v951
        %v982 = vpack.c.b16 %v956, %v954
        %v983 = vpack.c.b16 %v957, %v955
        %v984 = vpack.c.b16 %v960, %v958
        %v985 = vpack.c.b16 %v961, %v959
        %v986 = vpack.c.b16 %v964, %v962
        %v987 = vpack.c.b16 %v965, %v963
        %v988 = vpack.c.b16 %v968, %v966
        %v989 = vpack.c.b16 %v969, %v967
        %v990 = vpack.c.b16 %v972, %v970
        %v991 = vpack.c.b16 %v973, %v971
        %v992 = vpack.c.b16 %v976, %v974
        %v993 = vpack.c.b16 %v977, %v975
        %1010 = vmatprep.subr.bf16.mxu0 %v979
        %1011 = vmatpush1.bf16.msra.mxu0 %v978
        %1012 = vmatprep.subr.bf16.mxu0 %v981
        %1013 = vmatpush1.bf16.msra.mxu0 %v980
        %1014 = vmatprep.subr.bf16.mxu0 %v983
        %1015 = vmatpush1.bf16.msra.mxu0 %v982
        %1016 = vmatprep.subr.bf16.mxu0 %v985
        %1017 = vmatpush1.bf16.msra.mxu0 %v984
        %1018 = vmatprep.subr.bf16.mxu0 %v987
        %1019 = vmatpush1.bf16.msra.mxu0 %v986
        %1020 = vmatprep.subr.bf16.mxu0 %v989
        %1021 = vmatpush1.bf16.msra.mxu0 %v988
        %1022 = vmatprep.subr.bf16.mxu0 %v991
        %1023 = vmatpush1.bf16.msra.mxu0 %v990
        %1024 = vmatprep.subr.bf16.mxu0 %v993
        %1025 = vmatpush1.bf16.msra.mxu0 %v992
        %1026 = vmatprep.subr.bf16.mxu0 0
        %1027 = vmatpush1.bf16.msra.mxu0 0
        %1028 = vmatprep.subr.bf16.mxu0 0
        %1029 = vmatpush1.bf16.msra.mxu0 0
        %1030 = vmatprep.subr.bf16.mxu0 0
        %1031 = vmatpush1.bf16.msra.mxu0 0
        %1032 = vmatprep.subr.bf16.mxu0 0
        %1033 = vmatpush1.bf16.msra.mxu0 0
        %1034 = vmatprep.subr.bf16.mxu0 0
        %1035 = vmatpush1.bf16.msra.mxu0 0
        %1036 = vmatprep.subr.bf16.mxu0 0
        %1037 = vmatpush1.bf16.msra.mxu0 0
        %1038 = vmatprep.subr.bf16.mxu0 0
        %1039 = vmatpush1.bf16.msra.mxu0 0
        %1040 = vmatprep.subr.bf16.mxu0 0
        %1041 = vmatpush1.bf16.msra.mxu0 0
        %1042 = vmatprep.mubr.bf16.mxu0 0
        %1043 = vmatmul.mubr.bf16.gmra.mrb[0].mxu0 %v895
        %v1044 = vpop.f32.mrb[0].mxu0
        %v1045 = vadd.f32 %v923, %v1044
        %v1046 = vpop.f32.mrb[0].mxu0
        %v1047 = vadd.f32 %v927, %v1046
        %v1048 = vpop.f32.mrb[0].mxu0
        %v1049 = vadd.f32 %v923, %v1048
        %v1050 = vpop.f32.mrb[0].mxu0
        %v1051 = vadd.f32 %v927, %v1050
        %1052 = vmatprep.mubr.bf16.mxu0 0
        %1053 = vmatmul.mubr.bf16.gmra.mrb[0].mxu0 %v896
        %v1054 = vpop.f32.mrb[0].mxu0
        %v1055 = vadd.f32 %v923, %v1054
        %v1056 = vpop.f32.mrb[0].mxu0
        %v1057 = vadd.f32 %v927, %v1056
        %v1058 = vpop.f32.mrb[0].mxu0
        %v1059 = vadd.f32 %v923, %v1058
        %v1060 = vpop.f32.mrb[0].mxu0
        %v1061 = vadd.f32 %v927, %v1060
        %1062 = vmatprep.mubr.bf16.mxu0 0
        %1063 = vmatmul.mubr.bf16.gmra.mrb[0].mxu0 %v897
        %v1064 = vpop.f32.mrb[0].mxu0
        %v1065 = vadd.f32 %v923, %v1064
        %v1066 = vpop.f32.mrb[0].mxu0
        %v1067 = vadd.f32 %v927, %v1066
        %v1068 = vpop.f32.mrb[0].mxu0
        %v1069 = vadd.f32 %v923, %v1068
        %v1070 = vpop.f32.mrb[0].mxu0
        %v1071 = vadd.f32 %v927, %v1070
        %1072 = vmatprep.mubr.bf16.mxu0 0
        %1073 = vmatmul.mubr.bf16.gmra.mrb[0].mxu0 %v898
        %v1074 = vpop.f32.mrb[0].mxu0
        %v1075 = vadd.f32 %v923, %v1074
        %v1076 = vpop.f32.mrb[0].mxu0
        %v1077 = vadd.f32 %v927, %v1076
        %v1078 = vpop.f32.mrb[0].mxu0
        %v1079 = vadd.f32 %v923, %v1078
        %v1080 = vpop.f32.mrb[0].mxu0
        %v1081 = vadd.f32 %v927, %v1080
        %1082 = vmatprep.mubr.bf16.mxu0 0
        %1083 = vmatmul.mubr.bf16.gmra.mrb[0].mxu0 %v899
        %v1084 = vpop.f32.mrb[0].mxu0
        %v1085 = vadd.f32 %v923, %v1084
        %v1086 = vpop.f32.mrb[0].mxu0
        %v1087 = vadd.f32 %v927, %v1086
        %v1088 = vpop.f32.mrb[0].mxu0
        %v1089 = vadd.f32 %v923, %v1088
        %v1090 = vpop.f32.mrb[0].mxu0
        %v1091 = vadd.f32 %v927, %v1090
        %1092 = vmatprep.mubr.bf16.mxu0 0
        %1093 = vmatmul.mubr.bf16.gmra.mrb[0].mxu0 %v900
        %v1094 = vpop.f32.mrb[0].mxu0
        %v1095 = vadd.f32 %v923, %v1094
        %v1096 = vpop.f32.mrb[0].mxu0
        %v1097 = vadd.f32 %v927, %v1096
        %v1098 = vpop.f32.mrb[0].mxu0
        %v1099 = vadd.f32 %v923, %v1098
        %v1100 = vpop.f32.mrb[0].mxu0
        %v1101 = vadd.f32 %v927, %v1100
        %1102 = vmatprep.mubr.bf16.mxu0 0
        %1103 = vmatmul.mubr.bf16.gmra.mrb[0].mxu0 %v901
        %v1104 = vpop.f32.mrb[0].mxu0
        %v1105 = vadd.f32 %v923, %v1104
        %v1106 = vpop.f32.mrb[0].mxu0
        %v1107 = vadd.f32 %v927, %v1106
        %v1108 = vpop.f32.mrb[0].mxu0
        %v1109 = vpop.f32.mrb[0].mxu0
        %1110 = vdwg.mxu0
        %v1111 = vmul.f32 %v1045, 0.5
        %v1112 = vmul.f32 %v1047, 0.5
        %v1113 = vmul.f32 %v1049, 0.5
        %v1114 = vmul.f32 %v1051, 0.5
        %v1115 = vmul.f32 %v1055, 0.5
        %v1116 = vmul.f32 %v1057, 0.5
        %v1117 = vmul.f32 %v1059, 0.5
        %v1118 = vmul.f32 %v1061, 0.5
        %v1119 = vmul.f32 %v1065, 0.5
        %v1120 = vmul.f32 %v1067, 0.5
        %v1121 = vmul.f32 %v1069, 0.5
        %v1122 = vmul.f32 %v1071, 0.5
        %v1123 = vmul.f32 %v1075, 0.5
        %v1124 = vmul.f32 %v1077, 0.5
        %v1125 = vmul.f32 %v1079, 0.5
        %v1126 = vmul.f32 %v1081, 0.5
        %v1127 = vmul.f32 %v1085, 0.5
        %v1128 = vmul.f32 %v1087, 0.5
        %v1129 = vmul.f32 %v1089, 0.5
        %v1130 = vmul.f32 %v1091, 0.5
        %v1131 = vmul.f32 %v1095, 0.5
        %v1132 = vmul.f32 %v1097, 0.5
        %v1133 = vmul.f32 %v1099, 0.5
        %v1134 = vmul.f32 %v1101, 0.5
        %v1135 = vmul.f32 %v1105, 0.5
        %v1136 = vmul.f32 %v1107, 0.5
        %v1137 = vtanh.pop %v1111
        %v1138 = vtanh.pop %v1112
        %v1139 = vtanh.pop %v1113
        %v1140 = vtanh.pop %v1114
        %v1141 = vtanh.pop %v1115
        %v1142 = vtanh.pop %v1116
        %v1143 = vtanh.pop %v1117
        %v1144 = vtanh.pop %v1118
        %v1145 = vtanh.pop %v1119
        %v1146 = vtanh.pop %v1120
        %v1147 = vtanh.pop %v1121
        %v1148 = vtanh.pop %v1122
        %v1149 = vtanh.pop %v1123
        %v1150 = vtanh.pop %v1124
        %v1151 = vtanh.pop %v1125
        %v1152 = vtanh.pop %v1126
        %v1153 = vtanh.pop %v1127
        %v1154 = vtanh.pop %v1128
        %v1155 = vtanh.pop %v1129
        %v1156 = vtanh.pop %v1130
        %v1157 = vtanh.pop %v1131
        %v1158 = vtanh.pop %v1132
        %v1159 = vtanh.pop %v1133
        %v1160 = vtanh.pop %v1134
        %v1161 = vtanh.pop %v1135
        %v1162 = vtanh.pop %v1136
        %v1163 = vmul.f32 %v1137, 0.5
        %v1164 = vmul.f32 %v1138, 0.5
        %v1165 = vmul.f32 %v1139, 0.5
        %v1166 = vmul.f32 %v1140, 0.5
        %v1167 = vmul.f32 %v1141, 0.5
        %v1168 = vmul.f32 %v1142, 0.5
        %v1169 = vmul.f32 %v1143, 0.5
        %v1170 = vmul.f32 %v1144, 0.5
        %v1171 = vmul.f32 %v1145, 0.5
        %v1172 = vmul.f32 %v1146, 0.5
        %v1173 = vmul.f32 %v1147, 0.5
        %v1174 = vmul.f32 %v1148, 0.5
        %v1175 = vmul.f32 %v1149, 0.5
        %v1176 = vmul.f32 %v1150, 0.5
        %v1177 = vmul.f32 %v1151, 0.5
        %v1178 = vmul.f32 %v1152, 0.5
        %v1179 = vmul.f32 %v1153, 0.5
        %v1180 = vmul.f32 %v1154, 0.5
        %v1181 = vmul.f32 %v1155, 0.5
        %v1182 = vmul.f32 %v1156, 0.5
        %v1183 = vmul.f32 %v1157, 0.5
        %v1184 = vmul.f32 %v1158, 0.5
        %v1185 = vmul.f32 %v1159, 0.5
        %v1186 = vmul.f32 %v1160, 0.5
        %v1187 = vmul.f32 %v1161, 0.5
        %v1188 = vmul.f32 %v1162, 0.5
        %v1189 = vadd.f32 %v1163, 0.5
        %v1190 = vadd.f32 %v1164, 0.5
        %v1191 = vadd.f32 %v1165, 0.5
        %v1192 = vadd.f32 %v1166, 0.5
        %v1193 = vadd.f32 %v1167, 0.5
        %v1194 = vadd.f32 %v1168, 0.5
        %v1195 = vadd.f32 %v1169, 0.5
        %v1196 = vadd.f32 %v1170, 0.5
        %v1197 = vadd.f32 %v1171, 0.5
        %v1198 = vadd.f32 %v1172, 0.5
        %v1199 = vadd.f32 %v1173, 0.5
        %v1200 = vadd.f32 %v1174, 0.5
        %v1201 = vadd.f32 %v1175, 0.5
        %v1202 = vadd.f32 %v1176, 0.5
        %v1203 = vadd.f32 %v1177, 0.5
        %v1204 = vadd.f32 %v1178, 0.5
        %v1205 = vadd.f32 %v1179, 0.5
        %v1206 = vadd.f32 %v1180, 0.5
        %v1207 = vadd.f32 %v1181, 0.5
        %v1208 = vadd.f32 %v1182, 0.5
        %v1209 = vadd.f32 %v1183, 0.5
        %v1210 = vadd.f32 %v1184, 0.5
        %v1211 = vadd.f32 %v1185, 0.5
        %v1212 = vadd.f32 %v1186, 0.5
        %v1213 = vadd.f32 %v1187, 0.5
        %v1214 = vadd.f32 %v1188, 0.5
        %v1215 = vpack.c.bf16 %v1191, %v1189
        %v1216 = vpack.c.bf16 %v1192, %v1190
        %v1217 = vpack.c.bf16 %v1195, %v1193
        %v1218 = vpack.c.bf16 %v1196, %v1194
        %v1219 = vpack.c.bf16 %v1199, %v1197
        %v1220 = vpack.c.bf16 %v1200, %v1198
        %v1221 = vpack.c.bf16 %v1203, %v1201
        %v1222 = vpack.c.bf16 %v1204, %v1202
        %v1223 = vpack.c.bf16 %v1207, %v1205
        %v1224 = vpack.c.bf16 %v1208, %v1206
        %v1225 = vpack.c.bf16 %v1211, %v1209
        %v1226 = vpack.c.bf16 %v1212, %v1210
        %v1227 = vpack.c.bf16 %v1213, %v1213
        %v1228 = vpack.c.bf16 %v1214, %v1214
        %v1243 = vunpack.c.l.b16 %v1215
        %v1244 = vunpack.c.l.b16 %v1216
        %v1245 = vunpack.c.h.b16 %v1215
        %v1246 = vunpack.c.h.b16 %v1216
        %v1247 = vunpack.c.l.b16 %v1217
        %v1248 = vunpack.c.l.b16 %v1218
        %v1249 = vunpack.c.h.b16 %v1217
        %v1250 = vunpack.c.h.b16 %v1218
        %v1251 = vunpack.c.l.b16 %v1219
        %v1252 = vunpack.c.l.b16 %v1220
        %v1253 = vunpack.c.h.b16 %v1219
        %v1254 = vunpack.c.h.b16 %v1220
        %v1255 = vunpack.c.l.b16 %v1221
        %v1256 = vunpack.c.l.b16 %v1222
        %v1257 = vunpack.c.h.b16 %v1221
        %v1258 = vunpack.c.h.b16 %v1222
        %v1259 = vunpack.c.l.b16 %v1223
        %v1260 = vunpack.c.l.b16 %v1224
        %v1261 = vunpack.c.h.b16 %v1223
        %v1262 = vunpack.c.h.b16 %v1224
        %v1263 = vunpack.c.l.b16 %v1225
        %v1264 = vunpack.c.l.b16 %v1226
        %v1265 = vunpack.c.h.b16 %v1225
        %v1266 = vunpack.c.h.b16 %v1226
        %v1267 = vunpack.c.l.b16 %v1227
        %v1268 = vunpack.c.l.b16 %v1228
        %v1269 = vpack.c.b16 %v1244, %v1243
        %v1270 = vpack.c.b16 %v1246, %v1245
        %v1271 = vpack.c.b16 %v1248, %v1247
        %v1272 = vpack.c.b16 %v1250, %v1249
        %v1273 = vpack.c.b16 %v1252, %v1251
        %v1274 = vpack.c.b16 %v1254, %v1253
        %v1275 = vpack.c.b16 %v1256, %v1255
        %v1276 = vpack.c.b16 %v1258, %v1257
        %v1277 = vpack.c.b16 %v1260, %v1259
        %v1278 = vpack.c.b16 %v1262, %v1261
        %v1279 = vpack.c.b16 %v1264, %v1263
        %v1280 = vpack.c.b16 %v1266, %v1265
        %v1281 = vpack.c.b16 %v1268, %v1267
        %1295 = vst [vmem:[%s348] sm:$0xff] %v1269
        %1296 = vst [vmem:[%s348 + $0x8] sm:$0xff] %v1270
        %1297 = vst [vmem:[%s348 + $0x10] sm:$0xff] %v1271
        %1298 = vst [vmem:[%s348 + $0x18] sm:$0xff] %v1272
        %1299 = vst [vmem:[%s348 + $0x20] sm:$0xff] %v1273
        %1300 = vst [vmem:[%s348 + $0x28] sm:$0xff] %v1274
        %1301 = vst [vmem:[%s348 + $0x30] sm:$0xff] %v1275
        %1302 = vst [vmem:[%s348 + $0x38] sm:$0xff] %v1276
        %1303 = vst [vmem:[%s348 + $0x40] sm:$0xff] %v1277
        %1304 = vst [vmem:[%s348 + $0x48] sm:$0xff] %v1278
        %1305 = vst [vmem:[%s348 + $0x50] sm:$0xff] %v1279
        %1306 = vst [vmem:[%s348 + $0x58] sm:$0xff] %v1280
        %1307 = vst [vmem:[%s348 + $0x60] sm:$0xff] %v1281
        %s1308 = sand.u32 %s186, 1
        %s1309 = scalar_lea.sflag [#allocation4], %s1308
        %s1310 = sand.u32 %s186, 1
        %s1311 = smul.addr %s1310, 104
        %s1312 = scalar_lea.vmem [#allocation10], %s1311
        // Predicated region
        $region65: #{autoencoder_forward.1} parent=47 // pred_check
          %p1313 = pneg %p196
        $region66: #{autoencoder_forward.1} parent=47 // pred_check_branch
          %1315 = sbr.rel (%p1313) target = $region68
        $region67: #{autoencoder_forward.1} parent=47 // pred_region
          %s1316 = smul.u32 13, %s26
          %s1317 = ssub.s32 25, %s1316
          %p1318 = scmp.lt.s32.totalorder %s1317, 13
          %s1319 = scalar_select %p1318, %s1317, 13
          %s1320 = smul.u32 64, %s1319
          %s1321 = smul.u32 %s1320, 2
          %s1323 = ssub.s32 1664, %s1321
          %1324 = vsyncadd %s1309, %s1323
          %p1325 = scmp.ne.s32.totalorder 0, %s1321
          %s1326 = smul.addr %s1316, 2
          %s1327 = smul.addr %s1326, 64
          %s1328 = scalar_lea.hbm %s7, %s1327
          %s1329 = smul.u32 8, %s1319
          %s1330 = sshll.u32 %s1312, 4
          %s1331 = int_to_ptr.vmem [resolvable:$true] %s1330
          %s1332 = sshll.u32 %s1329, 4
          %1336 = dma.vmem_to_hbm [thread:$0]  (%p1325), %s1331, %s1332, %s1328, %s1309, 128, 128, 8
        $region68: #{autoencoder_forward.1} parent=47 // pred_fallthru
          _
      $region48: #{autoencoder_forward.1} parent=5 // pred_fallthru
        _
      %p1337 = scmp.le.s32.totalorder 2, %s21
      // Predicated region
      $region69: #{autoencoder_forward.1} parent=5 // pred_check
        %p1338 = pneg %p1337
      $region70: #{autoencoder_forward.1} parent=5 // pred_check_branch
        %1340 = sbr.rel (%p1338) target = $region72
      $region71: #{autoencoder_forward.1} parent=5 // pred_region
        %s1341 = ssub.s32 %s21, 2
        // Predicated region
        $region73: #{autoencoder_forward.1} parent=71 // pred_check
          %p1342 = pneg %p202
        $region74: #{autoencoder_forward.1} parent=71 // pred_check_branch
          %1344 = sbr.rel (%p1342) target = $region76
        $region75: #{autoencoder_forward.1} parent=71 // pred_region
          %s1345 = sand.u32 %s187, 1
          %s1346 = scalar_lea.sflag [#allocation4], %s1345
          %s1347 = sand.u32 %s187, 1
          %s1348 = smul.addr %s1347, 104
          %s1349 = scalar_lea.vmem [#allocation10], %s1348
          %1350 = dma.done %s1346, 1664
        $region76: #{autoencoder_forward.1} parent=71 // pred_fallthru
          _
      $region72: #{autoencoder_forward.1} parent=5 // pred_fallthru
        _
    $region6: #{autoencoder_forward.1} parent=1 // loop_footer
      %s25 = sadd.s32 1, %s21
    $region7: #{autoencoder_forward.1} parent=1 // loop_footer_branch
      %20 = sbr.rel target = $region3
    $region8: #{autoencoder_forward.1} parent=1 // loop_exit
      _
    %1351 = vsyncpa [#allocation3], 1
    %s1352 = scalar_lea.sflag [#allocation3], 1
    %1353 = vsyncpa %s1352, 1
    %1354 = vsyncpa [#allocation6], 1
    %1355 = vsyncpa [#allocation9], 1
    %1356 = vsyncpa [#allocation4], 1
    %s1357 = scalar_lea.sflag [#allocation4], 1
    %1358 = vsyncpa %s1357, 1

</llo_original>
